<compile_context>
chip_gen: v7x
topology: tpu7x:2x2x1
jax: 0.10.0
libtpu: 0.0.40
codegen_flags: <defaults>
</compile_context>

<pallas_src>
import jax
import jax.numpy as jnp
from jax.experimental import pallas as pl
from jax.experimental.pallas import tpu as pltpu

NUM_MODES = 4          # R
SPATIAL_HIDDEN = 32    # Hs   (R * Hs = 128 -> exactly one f32 lane tile)
TEMPORAL_HIDDEN = 32   # Ht
PADDED_MODES = 8       # R padded up to one sublane group (rows >= R are zero)


def _gelu(x):
    # tanh-approximate GELU (lowers to the EUP tanh slot on TPU).
    # TODO(synk): PyTorch nn.GELU() default is the exact erf form; swap in erf
    # if bit-level parity with the original module is required.
    return 0.5 * x * (1.0 + jnp.tanh(0.7978845608028654 * (x + 0.044715 * x * x * x)))


def _round_up(n, m):
    return ((n + m - 1) // m) * m


# --------------------------------- kernel ----------------------------------
def low_rank_kernel(xin_ref, w1a_ref, w2_ref, v1a_ref, wtail_ref, out_ref):
    # Elementwise compute dtype is taken from w2's storage dtype
    # (bf16 on v6e/v7x, f32 on v5e).  All MXU dots accumulate in f32.
    cdtype = w2_ref.dtype

    xin = xin_ref[...]        # (8, TB) f32  rows = [x0, x1, x2, t, 1, 0, 0, 0]
    w1a = w1a_ref[...]        # (128, 8) f32   spatial layer-1 weights + b1 fold
    w2 = w2_ref[...]          # (128, 128) cdtype  block-diagonal hidden->hidden
    v1a = v1a_ref[...]        # (32, 8) f32    temporal layer-1 (v1, c1) fold

    # Consolidated small weights (all slices sublane-aligned):
    w3 = wtail_ref[0:8, :].astype(cdtype)                    # (8, 128) per-mode readout
    v2 = wtail_ref[8:16, 0:TEMPORAL_HIDDEN].astype(cdtype)   # (8, 32)
    b3 = wtail_ref[16:24, 0:1]                               # (8, 1)   f32
    c2 = wtail_ref[24:32, 0:1]                               # (8, 1)   f32
    b2 = wtail_ref[32:160, 0:1]                              # (128, 1) f32

    # ---- temporal coefficient network: c_r(t) -----------------------------
    ht_pre = jnp.dot(v1a, xin, preferred_element_type=jnp.float32)   # (32, TB) f32
    ht = jnp.tanh(ht_pre.astype(cdtype))                             # (32, TB)
    c = jnp.dot(v2, ht, preferred_element_type=jnp.float32) + c2     # (8, TB) f32

    # ---- all R spatial basis networks at once ------------------------------
    # layer 1 + bias on the MXU (bias folded into the ones-row of xin)
    a1 = jnp.dot(w1a, xin, preferred_element_type=jnp.float32)       # (128, TB) f32
    h1 = _gelu(a1.astype(cdtype))                                    # (128, TB)
    # layer 2: one block-diagonal 128x128 matmul for all modes
    a2 = jnp.dot(w2, h1, preferred_element_type=jnp.float32) + b2    # (128, TB) f32
    h2 = _gelu(a2.astype(cdtype))                                    # (128, TB)
    # layer 3: per-mode readout folded into one (8,128) matmul; sin kept f32
    a3 = jnp.dot(w3, h2, preferred_element_type=jnp.float32) + b3    # (8, TB) f32
    phi = jnp.sin(a3)                                                # (8, TB) f32

    # ---- combine: p = sum_r c_r * phi_r  (padded rows contribute 0) --------
    out_ref[...] = jnp.sum(c * phi, axis=0, keepdims=True)           # (1, TB) f32


# ---------------- packing: PyTorch-style params -> kernel layout -----------
def pack_params(params, compute_dtype=jnp.float32):
    R, Hs, Ht = NUM_MODES, SPATIAL_HIDDEN, TEMPORAL_HIDDEN
    f32 = jnp.float32

    # Spatial layer-1: (128, 8) whose columns line up with the packed input
    # rows [x0, x1, x2, t, 1, 0, 0, 0]; column 4 carries b1 (ones-row fold).
    w1 = params["w1"].astype(f32).reshape(R * Hs, 3)
    b1 = params["b1"].astype(f32).reshape(R * Hs, 1)
    w1a = jnp.zeros((R * Hs, 8), f32).at[:, 0:3].set(w1).at[:, 4:5].set(b1)

    # Block-diagonal hidden->hidden (off-diagonal blocks exactly zero).
    w2_bd = jnp.zeros((R * Hs, R * Hs), f32)
    for r in range(R):
        w2_bd = w2_bd.at[r * Hs:(r + 1) * Hs, r * Hs:(r + 1) * Hs].set(
            params["w2"][r].astype(f32))

    # Temporal layer-1 fold: column 3 = v1 (multiplies t), column 4 = c1.
    v1a = (jnp.zeros((Ht, 8), f32)
           .at[:, 3:4].set(params["v1"].astype(f32).reshape(Ht, 1))
           .at[:, 4:5].set(params["c1"].astype(f32).reshape(Ht, 1)))

    # Consolidated small weights, sublane-stacked (all slices 8-row aligned):
    #   rows   0:8   w3 (per-mode readout in its 32-column block)
    #   rows   8:16  v2 (cols 0:Ht)
    #   rows  16:24  b3 (col 0)
    #   rows  24:32  c2 (col 0)
    #   rows 32:160  b2 (col 0)
    wtail = jnp.zeros((32 + R * Hs, R * Hs), f32)
    for r in range(R):
        wtail = wtail.at[r, r * Hs:(r + 1) * Hs].set(params["w3"][r].astype(f32))
    wtail = wtail.at[8:8 + R, 0:Ht].set(params["v2"].astype(f32))
    wtail = wtail.at[16:16 + R, 0].set(params["b3"].astype(f32))
    wtail = wtail.at[24:24 + R, 0].set(params["c2"].astype(f32))
    wtail = wtail.at[32:32 + R * Hs, 0].set(params["b2"].astype(f32).reshape(R * Hs))

    return (w1a, w2_bd.astype(compute_dtype), v1a, wtail)


# --------------------------------- wrapper ---------------------------------
def low_rank_forward(x, t, params, *, tile_b=4096, use_bf16=None):
    """x: (B, 3), t: (B,) or (B, 1) -> p: (B,) float32."""
    if use_bf16 is None:
        # bf16 VALU/EUP exists on v6e / v7x; keep f32 elementwise on v5e & older.
        try:
            kind = jax.devices()[0].device_kind.lower()
        except Exception:
            kind = ""
        use_bf16 = ("v6" in kind) or ("v7" in kind) or ("7x" in kind)
    cdtype = jnp.bfloat16 if use_bf16 else jnp.float32

    f32 = jnp.float32
    x = x.astype(f32)
    t = jnp.reshape(t, (-1,)).astype(f32)          # matches t.view(-1, 1)
    B = x.shape[0]

    # Adaptive batch tile: multiple of 128, no over-padding of tiny batches,
    # and at least two tiles when B is large enough so both v7x TCs get work.
    tb = min(int(tile_b), _round_up(B, 128))
    if B > 256 and pl.cdiv(B, tb) == 1:
        tb = _round_up(pl.cdiv(B, 2), 128)
    num_tiles = pl.cdiv(B, tb)
    b_pad = num_tiles * tb

    # Pack [x0, x1, x2, t, 1, 0, 0, 0] on sublanes, batch on lanes (single
    # relayout; in a training loop keep x pre-packed/padded to skip this).
    xin = jnp.concatenate([x.T, t[None, :], jnp.ones((1, B), f32)], axis=0)  # (5, B)
    xin = jnp.pad(xin, ((0, 3), (0, b_pad - B)))                             # (8, b_pad)

    w1a, w2, v1a, wtail = pack_params(params, cdtype)

    in_specs = [
        pl.BlockSpec((8, tb), lambda i: (0, i)),          # batch-tiled packed input
        pl.BlockSpec(w1a.shape, lambda i: (0, 0)),        # grid-invariant weights
        pl.BlockSpec(w2.shape, lambda i: (0, 0)),
        pl.BlockSpec(v1a.shape, lambda i: (0, 0)),
        pl.BlockSpec(wtail.shape, lambda i: (0, 0)),
    ]

    out = pl.pallas_call(
        low_rank_kernel,
        out_shape=jax.ShapeDtypeStruct((1, b_pad), jnp.float32),
        grid=(num_tiles,),
        in_specs=in_specs,
        out_specs=pl.BlockSpec((1, tb), lambda i: (0, i)),   # lane-dense row, full sublane dim
        compiler_params=pltpu.CompilerParams(
            dimension_semantics=("parallel",),   # megacore batch sharding on v7x
            vmem_limit_bytes=32 * 1024 * 1024,   # ~8-12 MiB live at tb=4096 f32; v5e default is only 16 MiB
        ),
    )(xin, w1a, w2, v1a, wtail)
    return out[0, :B]


# ---------------- deterministic parameter init (PyTorch-style uniform) -----
def init_params(key):
    R, Hs, Ht = NUM_MODES, SPATIAL_HIDDEN, TEMPORAL_HIDDEN
    ks = jax.random.split(key, 10)

    def u(k, shape, fan_in):
        bound = 1.0 / (fan_in ** 0.5)
        return jax.random.uniform(k, shape, jnp.float32, -bound, bound)

    return dict(
        # spatial basis nets (per-mode weights, PyTorch (out, in) orientation)
        w1=u(ks[0], (R, Hs, 3), 3),
        b1=u(ks[1], (R, Hs), 3),
        w2=u(ks[2], (R, Hs, Hs), Hs),
        b2=u(ks[3], (R, Hs), Hs),
        w3=u(ks[4], (R, Hs), Hs),
        b3=u(ks[5], (R,), Hs),
        # temporal net
        v1=u(ks[6], (Ht, 1), 1),
        c1=u(ks[7], (Ht,), 1),
        v2=u(ks[8], (R, Ht), Ht),
        c2=u(ks[9], (R,), Ht),
    )


# ---------------- plain-JAX reference (same math, no Pallas) ---------------
def reference_forward(x, t, params):
    R = NUM_MODES
    x = x.astype(jnp.float32)
    t = t.reshape(-1, 1).astype(jnp.float32)
    h = jnp.tanh(t @ params["v1"].T + params["c1"])               # (B, Ht)
    c = h @ params["v2"].T + params["c2"]                         # (B, R)
    phis = []
    for r in range(R):
        h1 = _gelu(x @ params["w1"][r].T + params["b1"][r])
        h2 = _gelu(h1 @ params["w2"][r].T + params["b2"][r])
        phis.append(jnp.sin(h2 @ params["w3"][r] + params["b3"][r]))   # (B,)
    phi = jnp.stack(phis, axis=1)                                 # (B, R)
    return jnp.sum(c * phi, axis=1)


if __name__ == "__main__":
    key = jax.random.PRNGKey(0)
    kx, kt, kp, kx2, kt2 = jax.random.split(key, 5)
    params = init_params(kp)

    # ---- small batch, f32 elementwise path --------------------------------
    B = 8
    x = jax.random.normal(kx, (B, 3), jnp.float32)       # spatial coords (batch, 3)
    t = jax.random.uniform(kt, (B, 1), jnp.float32)      # temporal coords (batch, 1)
    p_ref = reference_forward(x, t, params)

    p_f32 = jax.block_until_ready(low_rank_forward(x, t, params, use_bf16=False))
    assert p_f32.shape == (B,)
    assert jnp.allclose(p_f32, p_ref, atol=1e-3, rtol=1e-3), (p_f32, p_ref)

    # ---- bf16 elementwise path (the fast path on v6e/v7x) -----------------
    p_bf16 = jax.block_until_ready(low_rank_forward(x, t, params, use_bf16=True))
    assert p_bf16.shape == (B,)
    assert jnp.allclose(p_bf16, p_ref, atol=5e-2, rtol=5e-2), (p_bf16, p_ref)

    # ---- multi-tile + batch-padding path (3 tiles of 128, 84 padded cols) -
    B2 = 300
    x2 = jax.random.normal(kx2, (B2, 3), jnp.float32)
    t2 = jax.random.uniform(kt2, (B2,), jnp.float32)
    p2 = jax.block_until_ready(low_rank_forward(x2, t2, params, tile_b=128, use_bf16=False))
    p2_ref = reference_forward(x2, t2, params)
    assert p2.shape == (B2,)
    assert jnp.allclose(p2, p2_ref, atol=1e-3, rtol=1e-3), (p2, p2_ref)

    print("KERNEL_OK")
</pallas_src>

<mosaic_0001>
module attributes {stable_mosaic.version = 11 : i64} {
  func.func @low_rank_kernel(%arg0: i32, %arg1: memref<8x128xf32, #tpu.memory_space<vmem>>, %arg2: memref<128x8xf32, #tpu.memory_space<vmem>>, %arg3: memref<128x128xf32, #tpu.memory_space<vmem>>, %arg4: memref<32x8xf32, #tpu.memory_space<vmem>>, %arg5: memref<160x128xf32, #tpu.memory_space<vmem>>, %arg6: memref<1x128xf32, #tpu.memory_space<vmem>>) attributes {dimension_semantics = [#tpu.dimension_semantics<parallel>], iteration_bounds = array<i64: 1>, scalar_prefetch = 0 : i64, scratch_operands = 0 : i64, tpu.core_type = #tpu.core_type<tc>, window_params = [{transform_indices = @transform_0, window_bounds = array<i64: 8, 128>}, {pipeline_mode = #tpu.pipeline_mode<synchronous>, transform_indices = @transform_1, window_bounds = array<i64: 128, 8>}, {pipeline_mode = #tpu.pipeline_mode<synchronous>, transform_indices = @transform_2, window_bounds = array<i64: 128, 128>}, {pipeline_mode = #tpu.pipeline_mode<synchronous>, transform_indices = @transform_3, window_bounds = array<i64: 32, 8>}, {pipeline_mode = #tpu.pipeline_mode<synchronous>, transform_indices = @transform_4, window_bounds = array<i64: 160, 128>}, {transform_indices = @transform_5, window_bounds = array<i64: 1, 128>}]} {
    %c0 = arith.constant 0 : index
    %c0_0 = arith.constant 0 : index
    %0 = vector.load %arg1[%c0, %c0_0] : memref<8x128xf32, #tpu.memory_space<vmem>>, vector<8x128xf32>
    %c0_1 = arith.constant 0 : index
    %c0_2 = arith.constant 0 : index
    %1 = vector.load %arg2[%c0_1, %c0_2] : memref<128x8xf32, #tpu.memory_space<vmem>>, vector<128x8xf32>
    %c0_3 = arith.constant 0 : index
    %c0_4 = arith.constant 0 : index
    %2 = vector.load %arg3[%c0_3, %c0_4] : memref<128x128xf32, #tpu.memory_space<vmem>>, vector<128x128xf32>
    %c0_5 = arith.constant 0 : index
    %c0_6 = arith.constant 0 : index
    %3 = vector.load %arg4[%c0_5, %c0_6] : memref<32x8xf32, #tpu.memory_space<vmem>>, vector<32x8xf32>
    %c0_7 = arith.constant 0 : index
    %c0_8 = arith.constant 0 : index
    %4 = vector.load %arg5[%c0_7, %c0_8] : memref<160x128xf32, #tpu.memory_space<vmem>>, vector<8x128xf32>
    %c8 = arith.constant 8 : index
    %c0_9 = arith.constant 0 : index
    %5 = vector.load %arg5[%c8, %c0_9] : memref<160x128xf32, #tpu.memory_space<vmem>>, vector<8x32xf32>
    %c16 = arith.constant 16 : index
    %c0_10 = arith.constant 0 : index
    %6 = vector.load %arg5[%c16, %c0_10] : memref<160x128xf32, #tpu.memory_space<vmem>>, vector<8x1xf32>
    %c24 = arith.constant 24 : index
    %c0_11 = arith.constant 0 : index
    %7 = vector.load %arg5[%c24, %c0_11] : memref<160x128xf32, #tpu.memory_space<vmem>>, vector<8x1xf32>
    %c32 = arith.constant 32 : index
    %c0_12 = arith.constant 0 : index
    %8 = vector.load %arg5[%c32, %c0_12] : memref<160x128xf32, #tpu.memory_space<vmem>>, vector<128x1xf32>
    %cst = arith.constant dense<0.000000e+00> : vector<32x128xf32>
    %9 = tpu.matmul %3, %0, %cst {dimension_numbers = #tpu.dot_dimension_numbers<[1], [0], [0], [1], [0, 0, 1, 1], [], []>} : vector<32x8xf32>, vector<8x128xf32>, vector<32x128xf32> -> vector<32x128xf32>
    %10 = math.tanh %9 : vector<32x128xf32>
    %cst_13 = arith.constant dense<0.000000e+00> : vector<8x128xf32>
    %11 = tpu.matmul %5, %10, %cst_13 {dimension_numbers = #tpu.dot_dimension_numbers<[1], [0], [0], [1], [0, 0, 1, 1], [], []>} : vector<8x32xf32>, vector<32x128xf32>, vector<8x128xf32> -> vector<8x128xf32>
    %12 = vector.broadcast %7 : vector<8x1xf32> to vector<8x128xf32>
    %13 = arith.addf %11, %12 : vector<8x128xf32>
    %cst_14 = arith.constant dense<0.000000e+00> : vector<128x128xf32>
    %14 = tpu.matmul %1, %0, %cst_14 {dimension_numbers = #tpu.dot_dimension_numbers<[1], [0], [0], [1], [0, 0, 1, 1], [], []>} : vector<128x8xf32>, vector<8x128xf32>, vector<128x128xf32> -> vector<128x128xf32>
    %cst_15 = arith.constant 5.000000e-01 : f32
    %15 = vector.broadcast %cst_15 : f32 to vector<128x128xf32>
    %16 = arith.mulf %15, %14 : vector<128x128xf32>
    %cst_16 = arith.constant 4.471500e-02 : f32
    %17 = vector.broadcast %cst_16 : f32 to vector<128x128xf32>
    %18 = arith.mulf %17, %14 : vector<128x128xf32>
    %19 = arith.mulf %18, %14 : vector<128x128xf32>
    %20 = arith.mulf %19, %14 : vector<128x128xf32>
    %21 = arith.addf %14, %20 : vector<128x128xf32>
    %cst_17 = arith.constant 0.797884583 : f32
    %22 = vector.broadcast %cst_17 : f32 to vector<128x128xf32>
    %23 = arith.mulf %22, %21 : vector<128x128xf32>
    %24 = math.tanh %23 : vector<128x128xf32>
    %cst_18 = arith.constant 1.000000e+00 : f32
    %25 = vector.broadcast %cst_18 : f32 to vector<128x128xf32>
    %26 = arith.addf %25, %24 : vector<128x128xf32>
    %27 = arith.mulf %16, %26 : vector<128x128xf32>
    %cst_19 = arith.constant dense<0.000000e+00> : vector<128x128xf32>
    %28 = tpu.matmul %2, %27, %cst_19 {dimension_numbers = #tpu.dot_dimension_numbers<[1], [0], [0], [1], [0, 0, 1, 1], [], []>} : vector<128x128xf32>, vector<128x128xf32>, vector<128x128xf32> -> vector<128x128xf32>
    %29 = vector.broadcast %8 : vector<128x1xf32> to vector<128x128xf32>
    %30 = arith.addf %28, %29 : vector<128x128xf32>
    %cst_20 = arith.constant 5.000000e-01 : f32
    %31 = vector.broadcast %cst_20 : f32 to vector<128x128xf32>
    %32 = arith.mulf %31, %30 : vector<128x128xf32>
    %cst_21 = arith.constant 4.471500e-02 : f32
    %33 = vector.broadcast %cst_21 : f32 to vector<128x128xf32>
    %34 = arith.mulf %33, %30 : vector<128x128xf32>
    %35 = arith.mulf %34, %30 : vector<128x128xf32>
    %36 = arith.mulf %35, %30 : vector<128x128xf32>
    %37 = arith.addf %30, %36 : vector<128x128xf32>
    %cst_22 = arith.constant 0.797884583 : f32
    %38 = vector.broadcast %cst_22 : f32 to vector<128x128xf32>
    %39 = arith.mulf %38, %37 : vector<128x128xf32>
    %40 = math.tanh %39 : vector<128x128xf32>
    %cst_23 = arith.constant 1.000000e+00 : f32
    %41 = vector.broadcast %cst_23 : f32 to vector<128x128xf32>
    %42 = arith.addf %41, %40 : vector<128x128xf32>
    %43 = arith.mulf %32, %42 : vector<128x128xf32>
    %cst_24 = arith.constant dense<0.000000e+00> : vector<8x128xf32>
    %44 = tpu.matmul %4, %43, %cst_24 {dimension_numbers = #tpu.dot_dimension_numbers<[1], [0], [0], [1], [0, 0, 1, 1], [], []>} : vector<8x128xf32>, vector<128x128xf32>, vector<8x128xf32> -> vector<8x128xf32>
    %45 = vector.broadcast %6 : vector<8x1xf32> to vector<8x128xf32>
    %46 = arith.addf %44, %45 : vector<8x128xf32>
    %47 = math.sin %46 : vector<8x128xf32>
    %48 = arith.mulf %13, %47 : vector<8x128xf32>
    %cst_25 = arith.constant dense<0.000000e+00> : vector<128xf32>
    %49 = vector.multi_reduction <add>, %48, %cst_25 [0] : vector<8x128xf32> to vector<128xf32>
    %50 = vector.shape_cast %49 : vector<128xf32> to vector<1x128xf32>
    %c0_26 = arith.constant 0 : index
    %c0_27 = arith.constant 0 : index
    %51 = vector.load %arg6[%c0_26, %c0_27] : memref<1x128xf32, #tpu.memory_space<vmem>>, vector<1x128xf32>
    tpu.vector_store %arg6[%c0_26, %c0_27], %50 {strides = array<i32>} : memref<1x128xf32, #tpu.memory_space<vmem>>, vector<1x128xf32>,
    return
  }
  func.func @transform_0(%arg0: i32) -> (i32, i32) {
    %c0_i32 = arith.constant 0 : i32
    %c0_i32_0 = arith.constant 0 : i32
    return %c0_i32, %arg0 : i32, i32
  }
  func.func @transform_1(%arg0: i32) -> (i32, i32) {
    %c0_i32 = arith.constant 0 : i32
    %c0_i32_0 = arith.constant 0 : i32
    %c0_i32_1 = arith.constant 0 : i32
    return %c0_i32, %c0_i32_0 : i32, i32
  }
  func.func @transform_2(%arg0: i32) -> (i32, i32) {
    %c0_i32 = arith.constant 0 : i32
    %c0_i32_0 = arith.constant 0 : i32
    %c0_i32_1 = arith.constant 0 : i32
    return %c0_i32, %c0_i32_0 : i32, i32
  }
  func.func @transform_3(%arg0: i32) -> (i32, i32) {
    %c0_i32 = arith.constant 0 : i32
    %c0_i32_0 = arith.constant 0 : i32
    %c0_i32_1 = arith.constant 0 : i32
    return %c0_i32, %c0_i32_0 : i32, i32
  }
  func.func @transform_4(%arg0: i32) -> (i32, i32) {
    %c0_i32 = arith.constant 0 : i32
    %c0_i32_0 = arith.constant 0 : i32
    %c0_i32_1 = arith.constant 0 : i32
    return %c0_i32, %c0_i32_0 : i32, i32
  }
  func.func @transform_5(%arg0: i32) -> (i32, i32) {
    %c0_i32 = arith.constant 0 : i32
    %c0_i32_0 = arith.constant 0 : i32
    return %c0_i32, %arg0 : i32, i32
  }
}

</mosaic_0001>

<llo_original>
// kernel: tpu_custom_call.1
$region0: #{tpu_custom_call.1}
  #allocation0 [shape = 'u32[]', space=smem, size = 0x4, offset = 0x4, fixed_abs, tag = 'smem constant byte address 0x4 - core index']
  #allocation1 [shape = 'u32[144,128]{1,0:T(1,128)}', space=vmem, size = 0x12000, scoped, tag = 'internal scratch']
  %s0 = inlined_call_operand.vmem [shape: f32[8,128], index: 0, kind: input, shape index: {}]
  %s1 = inlined_call_operand.vmem [shape: f32[128,8], index: 1, kind: input, shape index: {}]
  %s2 = inlined_call_operand.hbm [shape: f32[128,128], index: 2, kind: input, shape index: {}]
  %s3 = inlined_call_operand.vmem [shape: f32[32,8], index: 3, kind: input, shape index: {}]
  %s4 = inlined_call_operand.vmem [shape: f32[160,128], index: 4, kind: input, shape index: {}]
  %s5 = inlined_call_operand.hbm [shape: f32[1,128], index: 5, kind: output, shape index: {}]
  %s6 = sld [smem:[#allocation0]]
  $region34: #{tpu_custom_call.1} parent=0
    _
  %s8 = ssub.s32 1, %s6
  %s9 = scalar_select 0, %s8, %s6
  $region1: #{tpu_custom_call.1} parent=0
    #allocation2 [shape = 'u8[65536]{0}', space=vmem, size = 0x10000, scoped, tag = 'input window, operand 2, single buffered']
    #allocation3 [shape = 's32[1]{0}', space=sflag, size = 0x4, scoped, tag = 'scoped memory for tpu_custom_call.1']
    #allocation4 [shape = 's32[1]{0}', space=sflag, size = 0x4, scoped, tag = 'scoped memory for tpu_custom_call.1']
    #allocation5 [shape = 'u8[512]{0}', space=vmem, size = 0x400, scoped, tag = 'output window, operand 0, single buffered']
    %10 = vsyncpa [#allocation3], 0
    %11 = vsyncpa [#allocation4], 0
    // Predicated region
    $region2: #{tpu_custom_call.1} parent=1 // pred_check
      _
    $region3: #{tpu_custom_call.1} parent=1 // pred_check_branch
      %13 = sbr.rel (0) target = $region5
    $region4: #{tpu_custom_call.1} parent=1 // pred_region
      _
    $region5: #{tpu_custom_call.1} parent=1 // pred_fallthru
      _
    // Predicated region
    $region6: #{tpu_custom_call.1} parent=1 // pred_check
      _
    $region7: #{tpu_custom_call.1} parent=1 // pred_check_branch
      %15 = sbr.rel (0) target = $region9
    $region8: #{tpu_custom_call.1} parent=1 // pred_region
      _
    $region9: #{tpu_custom_call.1} parent=1 // pred_fallthru
      _
    // Predicated region
    $region10: #{tpu_custom_call.1} parent=1 // pred_check
      _
    $region11: #{tpu_custom_call.1} parent=1 // pred_check_branch
      %17 = sbr.rel (0) target = $region13
    $region12: #{tpu_custom_call.1} parent=1 // pred_region
      %s19 = ssub.s32 2048, 2048
      %20 = vsyncadd [#allocation3], %s19
      %s21 = sshll.u32 [#allocation2], 4
      %s22 = int_to_ptr.vmem [resolvable:$true] %s21
      %27 = dma.hbm_to_vmem [thread:$0]  %s2, 2048, %s22, [#allocation3], 128, 128, 8
    $region13: #{tpu_custom_call.1} parent=1 // pred_fallthru
      _
    // Predicated region
    $region14: #{tpu_custom_call.1} parent=1 // pred_check
      _
    $region15: #{tpu_custom_call.1} parent=1 // pred_check_branch
      %29 = sbr.rel (0) target = $region17
    $region16: #{tpu_custom_call.1} parent=1 // pred_region
      _
    $region17: #{tpu_custom_call.1} parent=1 // pred_fallthru
      _
    // Predicated region
    $region18: #{tpu_custom_call.1} parent=1 // pred_check
      _
    $region19: #{tpu_custom_call.1} parent=1 // pred_check_branch
      %31 = sbr.rel (0) target = $region21
    $region20: #{tpu_custom_call.1} parent=1 // pred_region
      _
    $region21: #{tpu_custom_call.1} parent=1 // pred_fallthru
      _
    // Predicated region
    $region22: #{tpu_custom_call.1} parent=1 // pred_check
      _
    $region23: #{tpu_custom_call.1} parent=1 // pred_check_branch
      %33 = sbr.rel (0) target = $region25
    $region24: #{tpu_custom_call.1} parent=1 // pred_region
      %34 = dma.done [#allocation3], 2048
    $region25: #{tpu_custom_call.1} parent=1 // pred_fallthru
      _
    %v35 = vld [vmem:[%s0] sm:$0xff]
    %v36 = vld [vmem:[%s1] sm:$0xff]
    %v37 = vld [vmem:[%s1 + $0x8] sm:$0xff]
    %v38 = vld [vmem:[%s1 + $0x10] sm:$0xff]
    %v39 = vld [vmem:[%s1 + $0x18] sm:$0xff]
    %v40 = vld [vmem:[%s1 + $0x20] sm:$0xff]
    %v41 = vld [vmem:[%s1 + $0x28] sm:$0xff]
    %v42 = vld [vmem:[%s1 + $0x30] sm:$0xff]
    %v43 = vld [vmem:[%s1 + $0x38] sm:$0xff]
    %v44 = vld [vmem:[%s1 + $0x40] sm:$0xff]
    %v45 = vld [vmem:[%s1 + $0x48] sm:$0xff]
    %v46 = vld [vmem:[%s1 + $0x50] sm:$0xff]
    %v47 = vld [vmem:[%s1 + $0x58] sm:$0xff]
    %v48 = vld [vmem:[%s1 + $0x60] sm:$0xff]
    %v49 = vld [vmem:[%s1 + $0x68] sm:$0xff]
    %v50 = vld [vmem:[%s1 + $0x70] sm:$0xff]
    %v51 = vld [vmem:[%s1 + $0x78] sm:$0xff]
    %v52 = vld [vmem:[#allocation2] sm:$0xff]
    %v53 = vld [vmem:[#allocation2 + $0x8] sm:$0xff]
    %v54 = vld [vmem:[#allocation2 + $0x10] sm:$0xff]
    %v55 = vld [vmem:[#allocation2 + $0x18] sm:$0xff]
    %v56 = vld [vmem:[#allocation2 + $0x20] sm:$0xff]
    %v57 = vld [vmem:[#allocation2 + $0x28] sm:$0xff]
    %v58 = vld [vmem:[#allocation2 + $0x30] sm:$0xff]
    %v59 = vld [vmem:[#allocation2 + $0x38] sm:$0xff]
    %v60 = vld [vmem:[#allocation2 + $0x40] sm:$0xff]
    %v61 = vld [vmem:[#allocation2 + $0x48] sm:$0xff]
    %v62 = vld [vmem:[#allocation2 + $0x50] sm:$0xff]
    %v63 = vld [vmem:[#allocation2 + $0x58] sm:$0xff]
    %v64 = vld [vmem:[#allocation2 + $0x60] sm:$0xff]
    %v65 = vld [vmem:[#allocation2 + $0x68] sm:$0xff]
    %v66 = vld [vmem:[#allocation2 + $0x70] sm:$0xff]
    %v67 = vld [vmem:[#allocation2 + $0x78] sm:$0xff]
    %v68 = vld [vmem:[%s3] sm:$0xff]
    %v69 = vld [vmem:[%s3 + $0x8] sm:$0xff]
    %v70 = vld [vmem:[%s3 + $0x10] sm:$0xff]
    %v71 = vld [vmem:[%s3 + $0x18] sm:$0xff]
    %v72 = vld [vmem:[%s4] sm:$0xff]
    %v73 = vld [vmem:[%s4 + $0x8] sm:$0xff]
    %v74 = vld [vmem:[%s4 + $0x10] sm:$0xff]
    %v75 = vld [vmem:[%s4 + $0x18] sm:$0xff]
    %v76 = vld [vmem:[%s4 + $0x20] sm:$0xff]
    %v77 = vld [vmem:[%s4 + $0x28] sm:$0xff]
    %v78 = vld [vmem:[%s4 + $0x30] sm:$0xff]
    %v79 = vld [vmem:[%s4 + $0x38] sm:$0xff]
    %v80 = vld [vmem:[%s4 + $0x40] sm:$0xff]
    %v81 = vld [vmem:[%s4 + $0x48] sm:$0xff]
    %v82 = vld [vmem:[%s4 + $0x50] sm:$0xff]
    %v83 = vld [vmem:[%s4 + $0x58] sm:$0xff]
    %v84 = vld [vmem:[%s4 + $0x60] sm:$0xff]
    %v85 = vld [vmem:[%s4 + $0x68] sm:$0xff]
    %v86 = vld [vmem:[%s4 + $0x70] sm:$0xff]
    %v87 = vld [vmem:[%s4 + $0x78] sm:$0xff]
    %v88 = vld [vmem:[%s4 + $0x80] sm:$0xff]
    %v89 = vld [vmem:[%s4 + $0x88] sm:$0xff]
    %v90 = vld [vmem:[%s4 + $0x90] sm:$0xff]
    %v91 = vld [vmem:[%s4 + $0x98] sm:$0xff]
    %vm92 = vcmask 64512
    %v94 = vsel %vm92, %v68, 0
    %v97 = vsel %vm92, %v69, 0
    %v100 = vsel %vm92, %v70, 0
    %v103 = vsel %vm92, %v71, 0
    %105 = vmatprep.subr.mxu0 0.0
    %106 = vmatpush1.msra.mxu0 %v35
    %107 = vmatprep.subr.mxu0 0.0
    %108 = vmatpush1.msra.mxu0 0.0
    %109 = vmatprep.subr.mxu0 0.0
    %110 = vmatpush1.msra.mxu0 0.0
    %111 = vmatprep.subr.mxu0 0.0
    %112 = vmatpush1.msra.mxu0 0.0
    %113 = vmatprep.subr.mxu0 0.0
    %114 = vmatpush1.msra.mxu0 0.0
    %115 = vmatprep.subr.mxu0 0.0
    %116 = vmatpush1.msra.mxu0 0.0
    %117 = vmatprep.subr.mxu0 0.0
    %118 = vmatpush1.msra.mxu0 0.0
    %119 = vmatprep.subr.mxu0 0.0
    %120 = vmatpush1.msra.mxu0 0.0
    %121 = vmatprep.subr.mxu0 0.0
    %122 = vmatpush1.msra.mxu0 0.0
    %123 = vmatprep.subr.mxu0 0.0
    %124 = vmatpush1.msra.mxu0 0.0
    %125 = vmatprep.subr.mxu0 0.0
    %126 = vmatpush1.msra.mxu0 0.0
    %127 = vmatprep.subr.mxu0 0.0
    %128 = vmatpush1.msra.mxu0 0.0
    %129 = vmatprep.subr.mxu0 0.0
    %130 = vmatpush1.msra.mxu0 0.0
    %131 = vmatprep.subr.mxu0 0.0
    %132 = vmatpush1.msra.mxu0 0.0
    %133 = vmatprep.subr.mxu0 0.0
    %134 = vmatpush1.msra.mxu0 0.0
    %135 = vmatprep.subr.mxu0 0.0
    %136 = vmatpush1.msra.mxu0 0.0
    %137 = vmatprep.subr.mxu0 0.0
    %138 = vmatpush1.msra.mxu0 0.0
    %139 = vmatprep.subr.mxu0 0.0
    %140 = vmatpush1.msra.mxu0 0.0
    %141 = vmatprep.subr.mxu0 0.0
    %142 = vmatpush1.msra.mxu0 0.0
    %143 = vmatprep.subr.mxu0 0.0
    %144 = vmatpush1.msra.mxu0 0.0
    %145 = vmatprep.subr.mxu0 0.0
    %146 = vmatpush1.msra.mxu0 0.0
    %147 = vmatprep.subr.mxu0 0.0
    %148 = vmatpush1.msra.mxu0 0.0
    %149 = vmatprep.subr.mxu0 0.0
    %150 = vmatpush1.msra.mxu0 0.0
    %151 = vmatprep.subr.mxu0 0.0
    %152 = vmatpush1.msra.mxu0 0.0
    %153 = vmatprep.subr.mxu0 0.0
    %154 = vmatpush1.msra.mxu0 0.0
    %155 = vmatprep.subr.mxu0 0.0
    %156 = vmatpush1.msra.mxu0 0.0
    %157 = vmatprep.subr.mxu0 0.0
    %158 = vmatpush1.msra.mxu0 0.0
    %159 = vmatprep.subr.mxu0 0.0
    %160 = vmatpush1.msra.mxu0 0.0
    %161 = vmatprep.subr.mxu0 0.0
    %162 = vmatpush1.msra.mxu0 0.0
    %163 = vmatprep.subr.mxu0 0.0
    %164 = vmatpush1.msra.mxu0 0.0
    %165 = vmatprep.subr.mxu0 0.0
    %166 = vmatpush1.msra.mxu0 0.0
    %167 = vmatprep.subr.mxu0 0.0
    %168 = vmatpush1.msra.mxu0 0.0
    %169 = vmatprep.mubr.f32.mxu0 0.0
    %170 = vmatmul.mubr.f32.gmra.mrb[0].mxu0 %v94
    %v171 = vpop.f32.mrb[0].mxu0
    %v172 = vadd.f32 0.0, %v171
    %v173 = vpop.f32.mrb[0].mxu0
    %174 = vmatprep.mubr.f32.mxu0 0.0
    %175 = vmatmul.mubr.f32.gmra.mrb[0].mxu0 %v97
    %v176 = vpop.f32.mrb[0].mxu0
    %v177 = vadd.f32 0.0, %v176
    %v178 = vpop.f32.mrb[0].mxu0
    %179 = vmatprep.mubr.f32.mxu0 0.0
    %180 = vmatmul.mubr.f32.gmra.mrb[0].mxu0 %v100
    %v181 = vpop.f32.mrb[0].mxu0
    %v182 = vadd.f32 0.0, %v181
    %v183 = vpop.f32.mrb[0].mxu0
    %184 = vmatprep.mubr.f32.mxu0 0.0
    %185 = vmatmul.mubr.f32.gmra.mrb[0].mxu0 %v103
    %v186 = vpop.f32.mrb[0].mxu0
    %v187 = vadd.f32 0.0, %v186
    %v188 = vpop.f32.mrb[0].mxu0
    %189 = vdwg.mxu0
    %v190 = vtanh.pop %v172
    %v191 = vtanh.pop %v177
    %v192 = vtanh.pop %v182
    %v193 = vtanh.pop %v187
    %195 = vset.pattern.permute.xlu0 0
    %196 = vperm.xlu0 %195, %v75
    %v197 = vpop.permute.xlu0 %196
    %vm199 = vcmask 261120
    %v201 = vsel %vm199, %v73, 0
    %203 = vmatprep.subr.mxu0 0.0
    %204 = vmatpush1.msra.mxu0 %v190
    %205 = vmatprep.subr.mxu0 0.0
    %206 = vmatpush1.msra.mxu0 %v191
    %207 = vmatprep.subr.mxu0 0.0
    %208 = vmatpush1.msra.mxu0 %v192
    %209 = vmatprep.subr.mxu0 0.0
    %210 = vmatpush1.msra.mxu0 %v193
    %211 = vmatprep.subr.mxu0 0.0
    %212 = vmatpush1.msra.mxu0 0.0
    %213 = vmatprep.subr.mxu0 0.0
    %214 = vmatpush1.msra.mxu0 0.0
    %215 = vmatprep.subr.mxu0 0.0
    %216 = vmatpush1.msra.mxu0 0.0
    %217 = vmatprep.subr.mxu0 0.0
    %218 = vmatpush1.msra.mxu0 0.0
    %219 = vmatprep.subr.mxu0 0.0
    %220 = vmatpush1.msra.mxu0 0.0
    %221 = vmatprep.subr.mxu0 0.0
    %222 = vmatpush1.msra.mxu0 0.0
    %223 = vmatprep.subr.mxu0 0.0
    %224 = vmatpush1.msra.mxu0 0.0
    %225 = vmatprep.subr.mxu0 0.0
    %226 = vmatpush1.msra.mxu0 0.0
    %227 = vmatprep.subr.mxu0 0.0
    %228 = vmatpush1.msra.mxu0 0.0
    %229 = vmatprep.subr.mxu0 0.0
    %230 = vmatpush1.msra.mxu0 0.0
    %231 = vmatprep.subr.mxu0 0.0
    %232 = vmatpush1.msra.mxu0 0.0
    %233 = vmatprep.subr.mxu0 0.0
    %234 = vmatpush1.msra.mxu0 0.0
    %235 = vmatprep.subr.mxu0 0.0
    %236 = vmatpush1.msra.mxu0 0.0
    %237 = vmatprep.subr.mxu0 0.0
    %238 = vmatpush1.msra.mxu0 0.0
    %239 = vmatprep.subr.mxu0 0.0
    %240 = vmatpush1.msra.mxu0 0.0
    %241 = vmatprep.subr.mxu0 0.0
    %242 = vmatpush1.msra.mxu0 0.0
    %243 = vmatprep.subr.mxu0 0.0
    %244 = vmatpush1.msra.mxu0 0.0
    %245 = vmatprep.subr.mxu0 0.0
    %246 = vmatpush1.msra.mxu0 0.0
    %247 = vmatprep.subr.mxu0 0.0
    %248 = vmatpush1.msra.mxu0 0.0
    %249 = vmatprep.subr.mxu0 0.0
    %250 = vmatpush1.msra.mxu0 0.0
    %251 = vmatprep.subr.mxu0 0.0
    %252 = vmatpush1.msra.mxu0 0.0
    %253 = vmatprep.subr.mxu0 0.0
    %254 = vmatpush1.msra.mxu0 0.0
    %255 = vmatprep.subr.mxu0 0.0
    %256 = vmatpush1.msra.mxu0 0.0
    %257 = vmatprep.subr.mxu0 0.0
    %258 = vmatpush1.msra.mxu0 0.0
    %259 = vmatprep.subr.mxu0 0.0
    %260 = vmatpush1.msra.mxu0 0.0
    %261 = vmatprep.subr.mxu0 0.0
    %262 = vmatpush1.msra.mxu0 0.0
    %263 = vmatprep.subr.mxu0 0.0
    %264 = vmatpush1.msra.mxu0 0.0
    %265 = vmatprep.subr.mxu0 0.0
    %266 = vmatpush1.msra.mxu0 0.0
    %267 = vmatprep.mubr.f32.mxu0 0.0
    %268 = vmatmul.mubr.f32.gmra.mrb[0].mxu0 %v201
    %v269 = vpop.f32.mrb[0].mxu0
    %v270 = vadd.f32 %v197, %v269
    %v271 = vpop.f32.mrb[0].mxu0
    %272 = vdwg.mxu0
    %v274 = vsel %vm92, %v36, 0
    %v277 = vsel %vm92, %v37, 0
    %v280 = vsel %vm92, %v38, 0
    %v283 = vsel %vm92, %v39, 0
    %v286 = vsel %vm92, %v40, 0
    %v289 = vsel %vm92, %v41, 0
    %v292 = vsel %vm92, %v42, 0
    %v295 = vsel %vm92, %v43, 0
    %v298 = vsel %vm92, %v44, 0
    %v301 = vsel %vm92, %v45, 0
    %v304 = vsel %vm92, %v46, 0
    %v307 = vsel %vm92, %v47, 0
    %v310 = vsel %vm92, %v48, 0
    %v313 = vsel %vm92, %v49, 0
    %v316 = vsel %vm92, %v50, 0
    %v319 = vsel %vm92, %v51, 0
    %321 = vmatprep.subr.mxu0 0.0
    %322 = vmatpush1.msra.mxu0 %v35
    %323 = vmatprep.subr.mxu0 0.0
    %324 = vmatpush1.msra.mxu0 0.0
    %325 = vmatprep.subr.mxu0 0.0
    %326 = vmatpush1.msra.mxu0 0.0
    %327 = vmatprep.subr.mxu0 0.0
    %328 = vmatpush1.msra.mxu0 0.0
    %329 = vmatprep.subr.mxu0 0.0
    %330 = vmatpush1.msra.mxu0 0.0
    %331 = vmatprep.subr.mxu0 0.0
    %332 = vmatpush1.msra.mxu0 0.0
    %333 = vmatprep.subr.mxu0 0.0
    %334 = vmatpush1.msra.mxu0 0.0
    %335 = vmatprep.subr.mxu0 0.0
    %336 = vmatpush1.msra.mxu0 0.0
    %337 = vmatprep.subr.mxu0 0.0
    %338 = vmatpush1.msra.mxu0 0.0
    %339 = vmatprep.subr.mxu0 0.0
    %340 = vmatpush1.msra.mxu0 0.0
    %341 = vmatprep.subr.mxu0 0.0
    %342 = vmatpush1.msra.mxu0 0.0
    %343 = vmatprep.subr.mxu0 0.0
    %344 = vmatpush1.msra.mxu0 0.0
    %345 = vmatprep.subr.mxu0 0.0
    %346 = vmatpush1.msra.mxu0 0.0
    %347 = vmatprep.subr.mxu0 0.0
    %348 = vmatpush1.msra.mxu0 0.0
    %349 = vmatprep.subr.mxu0 0.0
    %350 = vmatpush1.msra.mxu0 0.0
    %351 = vmatprep.subr.mxu0 0.0
    %352 = vmatpush1.msra.mxu0 0.0
    %353 = vmatprep.subr.mxu0 0.0
    %354 = vmatpush1.msra.mxu0 0.0
    %355 = vmatprep.subr.mxu0 0.0
    %356 = vmatpush1.msra.mxu0 0.0
    %357 = vmatprep.subr.mxu0 0.0
    %358 = vmatpush1.msra.mxu0 0.0
    %359 = vmatprep.subr.mxu0 0.0
    %360 = vmatpush1.msra.mxu0 0.0
    %361 = vmatprep.subr.mxu0 0.0
    %362 = vmatpush1.msra.mxu0 0.0
    %363 = vmatprep.subr.mxu0 0.0
    %364 = vmatpush1.msra.mxu0 0.0
    %365 = vmatprep.subr.mxu0 0.0
    %366 = vmatpush1.msra.mxu0 0.0
    %367 = vmatprep.subr.mxu0 0.0
    %368 = vmatpush1.msra.mxu0 0.0
    %369 = vmatprep.subr.mxu0 0.0
    %370 = vmatpush1.msra.mxu0 0.0
    %371 = vmatprep.subr.mxu0 0.0
    %372 = vmatpush1.msra.mxu0 0.0
    %373 = vmatprep.subr.mxu0 0.0
    %374 = vmatpush1.msra.mxu0 0.0
    %375 = vmatprep.subr.mxu0 0.0
    %376 = vmatpush1.msra.mxu0 0.0
    %377 = vmatprep.subr.mxu0 0.0
    %378 = vmatpush1.msra.mxu0 0.0
    %379 = vmatprep.subr.mxu0 0.0
    %380 = vmatpush1.msra.mxu0 0.0
    %381 = vmatprep.subr.mxu0 0.0
    %382 = vmatpush1.msra.mxu0 0.0
    %383 = vmatprep.subr.mxu0 0.0
    %384 = vmatpush1.msra.mxu0 0.0
    %385 = vmatprep.mubr.f32.mxu0 0.0
    %386 = vmatmul.mubr.f32.gmra.mrb[0].mxu0 %v274
    %v387 = vpop.f32.mrb[0].mxu0
    %v388 = vadd.f32 0.0, %v387
    %v389 = vpop.f32.mrb[0].mxu0
    %390 = vmatprep.mubr.f32.mxu0 0.0
    %391 = vmatmul.mubr.f32.gmra.mrb[0].mxu0 %v277
    %v392 = vpop.f32.mrb[0].mxu0
    %v393 = vadd.f32 0.0, %v392
    %v394 = vpop.f32.mrb[0].mxu0
    %395 = vmatprep.mubr.f32.mxu0 0.0
    %396 = vmatmul.mubr.f32.gmra.mrb[0].mxu0 %v280
    %v397 = vpop.f32.mrb[0].mxu0
    %v398 = vadd.f32 0.0, %v397
    %v399 = vpop.f32.mrb[0].mxu0
    %400 = vmatprep.mubr.f32.mxu0 0.0
    %401 = vmatmul.mubr.f32.gmra.mrb[0].mxu0 %v283
    %v402 = vpop.f32.mrb[0].mxu0
    %v403 = vadd.f32 0.0, %v402
    %v404 = vpop.f32.mrb[0].mxu0
    %405 = vmatprep.mubr.f32.mxu0 0.0
    %406 = vmatmul.mubr.f32.gmra.mrb[0].mxu0 %v286
    %v407 = vpop.f32.mrb[0].mxu0
    %v408 = vadd.f32 0.0, %v407
    %v409 = vpop.f32.mrb[0].mxu0
    %410 = vmatprep.mubr.f32.mxu0 0.0
    %411 = vmatmul.mubr.f32.gmra.mrb[0].mxu0 %v289
    %v412 = vpop.f32.mrb[0].mxu0
    %v413 = vadd.f32 0.0, %v412
    %v414 = vpop.f32.mrb[0].mxu0
    %415 = vmatprep.mubr.f32.mxu0 0.0
    %416 = vmatmul.mubr.f32.gmra.mrb[0].mxu0 %v292
    %v417 = vpop.f32.mrb[0].mxu0
    %v418 = vadd.f32 0.0, %v417
    %v419 = vpop.f32.mrb[0].mxu0
    %420 = vmatprep.mubr.f32.mxu0 0.0
    %421 = vmatmul.mubr.f32.gmra.mrb[0].mxu0 %v295
    %v422 = vpop.f32.mrb[0].mxu0
    %v423 = vadd.f32 0.0, %v422
    %v424 = vpop.f32.mrb[0].mxu0
    %425 = vmatprep.mubr.f32.mxu0 0.0
    %426 = vmatmul.mubr.f32.gmra.mrb[0].mxu0 %v298
    %v427 = vpop.f32.mrb[0].mxu0
    %v428 = vadd.f32 0.0, %v427
    %v429 = vpop.f32.mrb[0].mxu0
    %430 = vmatprep.mubr.f32.mxu0 0.0
    %431 = vmatmul.mubr.f32.gmra.mrb[0].mxu0 %v301
    %v432 = vpop.f32.mrb[0].mxu0
    %v433 = vadd.f32 0.0, %v432
    %v434 = vpop.f32.mrb[0].mxu0
    %435 = vmatprep.mubr.f32.mxu0 0.0
    %436 = vmatmul.mubr.f32.gmra.mrb[0].mxu0 %v304
    %v437 = vpop.f32.mrb[0].mxu0
    %v438 = vadd.f32 0.0, %v437
    %v439 = vpop.f32.mrb[0].mxu0
    %440 = vmatprep.mubr.f32.mxu0 0.0
    %441 = vmatmul.mubr.f32.gmra.mrb[0].mxu0 %v307
    %v442 = vpop.f32.mrb[0].mxu0
    %v443 = vadd.f32 0.0, %v442
    %v444 = vpop.f32.mrb[0].mxu0
    %445 = vmatprep.mubr.f32.mxu0 0.0
    %446 = vmatmul.mubr.f32.gmra.mrb[0].mxu0 %v310
    %v447 = vpop.f32.mrb[0].mxu0
    %v448 = vadd.f32 0.0, %v447
    %v449 = vpop.f32.mrb[0].mxu0
    %450 = vmatprep.mubr.f32.mxu0 0.0
    %451 = vmatmul.mubr.f32.gmra.mrb[0].mxu0 %v313
    %v452 = vpop.f32.mrb[0].mxu0
    %v453 = vadd.f32 0.0, %v452
    %v454 = vpop.f32.mrb[0].mxu0
    %455 = vmatprep.mubr.f32.mxu0 0.0
    %456 = vmatmul.mubr.f32.gmra.mrb[0].mxu0 %v316
    %v457 = vpop.f32.mrb[0].mxu0
    %v458 = vadd.f32 0.0, %v457
    %v459 = vpop.f32.mrb[0].mxu0
    %460 = vmatprep.mubr.f32.mxu0 0.0
    %461 = vmatmul.mubr.f32.gmra.mrb[0].mxu0 %v319
    %v462 = vpop.f32.mrb[0].mxu0
    %v463 = vadd.f32 0.0, %v462
    %v464 = vpop.f32.mrb[0].mxu0
    %465 = vdwg.mxu0
    %v466 = vmul.f32 %v388, 0.5
    %v467 = vmul.f32 %v393, 0.5
    %v468 = vmul.f32 %v398, 0.5
    %v469 = vmul.f32 %v403, 0.5
    %v470 = vmul.f32 %v408, 0.5
    %v471 = vmul.f32 %v413, 0.5
    %v472 = vmul.f32 %v418, 0.5
    %v473 = vmul.f32 %v423, 0.5
    %v474 = vmul.f32 %v428, 0.5
    %v475 = vmul.f32 %v433, 0.5
    %v476 = vmul.f32 %v438, 0.5
    %v477 = vmul.f32 %v443, 0.5
    %v478 = vmul.f32 %v448, 0.5
    %v479 = vmul.f32 %v453, 0.5
    %v480 = vmul.f32 %v458, 0.5
    %v481 = vmul.f32 %v463, 0.5
    %v482 = vmul.f32 %v388, 0.044715
    %v483 = vmul.f32 %v393, 0.044715
    %v484 = vmul.f32 %v398, 0.044715
    %v485 = vmul.f32 %v403, 0.044715
    %v486 = vmul.f32 %v408, 0.044715
    %v487 = vmul.f32 %v413, 0.044715
    %v488 = vmul.f32 %v418, 0.044715
    %v489 = vmul.f32 %v423, 0.044715
    %v490 = vmul.f32 %v428, 0.044715
    %v491 = vmul.f32 %v433, 0.044715
    %v492 = vmul.f32 %v438, 0.044715
    %v493 = vmul.f32 %v443, 0.044715
    %v494 = vmul.f32 %v448, 0.044715
    %v495 = vmul.f32 %v453, 0.044715
    %v496 = vmul.f32 %v458, 0.044715
    %v497 = vmul.f32 %v463, 0.044715
    %v498 = vmul.f32 %v482, %v388
    %v499 = vmul.f32 %v483, %v393
    %v500 = vmul.f32 %v484, %v398
    %v501 = vmul.f32 %v485, %v403
    %v502 = vmul.f32 %v486, %v408
    %v503 = vmul.f32 %v487, %v413
    %v504 = vmul.f32 %v488, %v418
    %v505 = vmul.f32 %v489, %v423
    %v506 = vmul.f32 %v490, %v428
    %v507 = vmul.f32 %v491, %v433
    %v508 = vmul.f32 %v492, %v438
    %v509 = vmul.f32 %v493, %v443
    %v510 = vmul.f32 %v494, %v448
    %v511 = vmul.f32 %v495, %v453
    %v512 = vmul.f32 %v496, %v458
    %v513 = vmul.f32 %v497, %v463
    %v514 = vmul.f32 %v498, %v388
    %v515 = vmul.f32 %v499, %v393
    %v516 = vmul.f32 %v500, %v398
    %v517 = vmul.f32 %v501, %v403
    %v518 = vmul.f32 %v502, %v408
    %v519 = vmul.f32 %v503, %v413
    %v520 = vmul.f32 %v504, %v418
    %v521 = vmul.f32 %v505, %v423
    %v522 = vmul.f32 %v506, %v428
    %v523 = vmul.f32 %v507, %v433
    %v524 = vmul.f32 %v508, %v438
    %v525 = vmul.f32 %v509, %v443
    %v526 = vmul.f32 %v510, %v448
    %v527 = vmul.f32 %v511, %v453
    %v528 = vmul.f32 %v512, %v458
    %v529 = vmul.f32 %v513, %v463
    %v530 = vadd.f32 %v388, %v514
    %v531 = vadd.f32 %v393, %v515
    %v532 = vadd.f32 %v398, %v516
    %v533 = vadd.f32 %v403, %v517
    %v534 = vadd.f32 %v408, %v518
    %v535 = vadd.f32 %v413, %v519
    %v536 = vadd.f32 %v418, %v520
    %v537 = vadd.f32 %v423, %v521
    %v538 = vadd.f32 %v428, %v522
    %v539 = vadd.f32 %v433, %v523
    %v540 = vadd.f32 %v438, %v524
    %v541 = vadd.f32 %v443, %v525
    %v542 = vadd.f32 %v448, %v526
    %v543 = vadd.f32 %v453, %v527
    %v544 = vadd.f32 %v458, %v528
    %v545 = vadd.f32 %v463, %v529
    %v546 = vmul.f32 %v530, 0.7978846
    %v547 = vmul.f32 %v531, 0.7978846
    %v548 = vmul.f32 %v532, 0.7978846
    %v549 = vmul.f32 %v533, 0.7978846
    %v550 = vmul.f32 %v534, 0.7978846
    %v551 = vmul.f32 %v535, 0.7978846
    %v552 = vmul.f32 %v536, 0.7978846
    %v553 = vmul.f32 %v537, 0.7978846
    %v554 = vmul.f32 %v538, 0.7978846
    %v555 = vmul.f32 %v539, 0.7978846
    %v556 = vmul.f32 %v540, 0.7978846
    %v557 = vmul.f32 %v541, 0.7978846
    %v558 = vmul.f32 %v542, 0.7978846
    %v559 = vmul.f32 %v543, 0.7978846
    %v560 = vmul.f32 %v544, 0.7978846
    %v561 = vmul.f32 %v545, 0.7978846
    %v562 = vtanh.pop %v546
    %v563 = vtanh.pop %v547
    %v564 = vtanh.pop %v548
    %v565 = vtanh.pop %v549
    %v566 = vtanh.pop %v550
    %v567 = vtanh.pop %v551
    %v568 = vtanh.pop %v552
    %v569 = vtanh.pop %v553
    %v570 = vtanh.pop %v554
    %v571 = vtanh.pop %v555
    %v572 = vtanh.pop %v556
    %v573 = vtanh.pop %v557
    %v574 = vtanh.pop %v558
    %v575 = vtanh.pop %v559
    %v576 = vtanh.pop %v560
    %v577 = vtanh.pop %v561
    %v578 = vadd.f32 %v562, 1.0
    %v579 = vadd.f32 %v563, 1.0
    %v580 = vadd.f32 %v564, 1.0
    %v581 = vadd.f32 %v565, 1.0
    %v582 = vadd.f32 %v566, 1.0
    %v583 = vadd.f32 %v567, 1.0
    %v584 = vadd.f32 %v568, 1.0
    %v585 = vadd.f32 %v569, 1.0
    %v586 = vadd.f32 %v570, 1.0
    %v587 = vadd.f32 %v571, 1.0
    %v588 = vadd.f32 %v572, 1.0
    %v589 = vadd.f32 %v573, 1.0
    %v590 = vadd.f32 %v574, 1.0
    %v591 = vadd.f32 %v575, 1.0
    %v592 = vadd.f32 %v576, 1.0
    %v593 = vadd.f32 %v577, 1.0
    %v594 = vmul.f32 %v466, %v578
    %v595 = vmul.f32 %v467, %v579
    %v596 = vmul.f32 %v468, %v580
    %v597 = vmul.f32 %v469, %v581
    %v598 = vmul.f32 %v470, %v582
    %v599 = vmul.f32 %v471, %v583
    %v600 = vmul.f32 %v472, %v584
    %v601 = vmul.f32 %v473, %v585
    %v602 = vmul.f32 %v474, %v586
    %v603 = vmul.f32 %v475, %v587
    %v604 = vmul.f32 %v476, %v588
    %v605 = vmul.f32 %v477, %v589
    %v606 = vmul.f32 %v478, %v590
    %v607 = vmul.f32 %v479, %v591
    %v608 = vmul.f32 %v480, %v592
    %v609 = vmul.f32 %v481, %v593
    %611 = vset.pattern.permute.xlu0 0
    %612 = vperm.xlu0 %611, %v76
    %v613 = vpop.permute.xlu0 %612
    %616 = vset.pattern.permute.xlu0 0
    %617 = vperm.xlu0 %616, %v77
    %v618 = vpop.permute.xlu0 %617
    %621 = vset.pattern.permute.xlu0 0
    %622 = vperm.xlu0 %621, %v78
    %v623 = vpop.permute.xlu0 %622
    %626 = vset.pattern.permute.xlu0 0
    %627 = vperm.xlu0 %626, %v79
    %v628 = vpop.permute.xlu0 %627
    %631 = vset.pattern.permute.xlu0 0
    %632 = vperm.xlu0 %631, %v80
    %v633 = vpop.permute.xlu0 %632
    %636 = vset.pattern.permute.xlu0 0
    %637 = vperm.xlu0 %636, %v81
    %v638 = vpop.permute.xlu0 %637
    %641 = vset.pattern.permute.xlu0 0
    %642 = vperm.xlu0 %641, %v82
    %v643 = vpop.permute.xlu0 %642
    %646 = vset.pattern.permute.xlu0 0
    %647 = vperm.xlu0 %646, %v83
    %v648 = vpop.permute.xlu0 %647
    %651 = vset.pattern.permute.xlu0 0
    %652 = vperm.xlu0 %651, %v84
    %v653 = vpop.permute.xlu0 %652
    %656 = vset.pattern.permute.xlu0 0
    %657 = vperm.xlu0 %656, %v85
    %v658 = vpop.permute.xlu0 %657
    %661 = vset.pattern.permute.xlu0 0
    %662 = vperm.xlu0 %661, %v86
    %v663 = vpop.permute.xlu0 %662
    %666 = vset.pattern.permute.xlu0 0
    %667 = vperm.xlu0 %666, %v87
    %v668 = vpop.permute.xlu0 %667
    %671 = vset.pattern.permute.xlu0 0
    %672 = vperm.xlu0 %671, %v88
    %v673 = vpop.permute.xlu0 %672
    %676 = vset.pattern.permute.xlu0 0
    %677 = vperm.xlu0 %676, %v89
    %v678 = vpop.permute.xlu0 %677
    %681 = vset.pattern.permute.xlu0 0
    %682 = vperm.xlu0 %681, %v90
    %v683 = vpop.permute.xlu0 %682
    %686 = vset.pattern.permute.xlu0 0
    %687 = vperm.xlu0 %686, %v91
    %v688 = vpop.permute.xlu0 %687
    %690 = vmatprep.subr.mxu0 0.0
    %691 = vmatpush1.msra.mxu0 %v594
    %692 = vmatprep.subr.mxu0 0.0
    %693 = vmatpush1.msra.mxu0 %v595
    %694 = vmatprep.subr.mxu0 0.0
    %695 = vmatpush1.msra.mxu0 %v596
    %696 = vmatprep.subr.mxu0 0.0
    %697 = vmatpush1.msra.mxu0 %v597
    %698 = vmatprep.subr.mxu0 0.0
    %699 = vmatpush1.msra.mxu0 %v598
    %700 = vmatprep.subr.mxu0 0.0
    %701 = vmatpush1.msra.mxu0 %v599
    %702 = vmatprep.subr.mxu0 0.0
    %703 = vmatpush1.msra.mxu0 %v600
    %704 = vmatprep.subr.mxu0 0.0
    %705 = vmatpush1.msra.mxu0 %v601
    %706 = vmatprep.subr.mxu0 0.0
    %707 = vmatpush1.msra.mxu0 %v602
    %708 = vmatprep.subr.mxu0 0.0
    %709 = vmatpush1.msra.mxu0 %v603
    %710 = vmatprep.subr.mxu0 0.0
    %711 = vmatpush1.msra.mxu0 %v604
    %712 = vmatprep.subr.mxu0 0.0
    %713 = vmatpush1.msra.mxu0 %v605
    %714 = vmatprep.subr.mxu0 0.0
    %715 = vmatpush1.msra.mxu0 %v606
    %716 = vmatprep.subr.mxu0 0.0
    %717 = vmatpush1.msra.mxu0 %v607
    %718 = vmatprep.subr.mxu0 0.0
    %719 = vmatpush1.msra.mxu0 %v608
    %720 = vmatprep.subr.mxu0 0.0
    %721 = vmatpush1.msra.mxu0 %v609
    %722 = vmatprep.subr.mxu0 0.0
    %723 = vmatpush1.msra.mxu0 0.0
    %724 = vmatprep.subr.mxu0 0.0
    %725 = vmatpush1.msra.mxu0 0.0
    %726 = vmatprep.subr.mxu0 0.0
    %727 = vmatpush1.msra.mxu0 0.0
    %728 = vmatprep.subr.mxu0 0.0
    %729 = vmatpush1.msra.mxu0 0.0
    %730 = vmatprep.subr.mxu0 0.0
    %731 = vmatpush1.msra.mxu0 0.0
    %732 = vmatprep.subr.mxu0 0.0
    %733 = vmatpush1.msra.mxu0 0.0
    %734 = vmatprep.subr.mxu0 0.0
    %735 = vmatpush1.msra.mxu0 0.0
    %736 = vmatprep.subr.mxu0 0.0
    %737 = vmatpush1.msra.mxu0 0.0
    %738 = vmatprep.subr.mxu0 0.0
    %739 = vmatpush1.msra.mxu0 0.0
    %740 = vmatprep.subr.mxu0 0.0
    %741 = vmatpush1.msra.mxu0 0.0
    %742 = vmatprep.subr.mxu0 0.0
    %743 = vmatpush1.msra.mxu0 0.0
    %744 = vmatprep.subr.mxu0 0.0
    %745 = vmatpush1.msra.mxu0 0.0
    %746 = vmatprep.subr.mxu0 0.0
    %747 = vmatpush1.msra.mxu0 0.0
    %748 = vmatprep.subr.mxu0 0.0
    %749 = vmatpush1.msra.mxu0 0.0
    %750 = vmatprep.subr.mxu0 0.0
    %751 = vmatpush1.msra.mxu0 0.0
    %752 = vmatprep.subr.mxu0 0.0
    %753 = vmatpush1.msra.mxu0 0.0
    %754 = vmatprep.mubr.f32.mxu0 0.0
    %755 = vmatmul.mubr.f32.gmra.mrb[0].mxu0 %v52
    %v756 = vpop.f32.mrb[0].mxu0
    %v757 = vadd.f32 %v613, %v756
    %v758 = vpop.f32.mrb[0].mxu0
    %759 = vmatprep.mubr.f32.mxu0 0.0
    %760 = vmatmul.mubr.f32.gmra.mrb[0].mxu0 %v53
    %v761 = vpop.f32.mrb[0].mxu0
    %v762 = vadd.f32 %v618, %v761
    %v763 = vpop.f32.mrb[0].mxu0
    %764 = vmatprep.mubr.f32.mxu0 0.0
    %765 = vmatmul.mubr.f32.gmra.mrb[0].mxu0 %v54
    %v766 = vpop.f32.mrb[0].mxu0
    %v767 = vadd.f32 %v623, %v766
    %v768 = vpop.f32.mrb[0].mxu0
    %769 = vmatprep.mubr.f32.mxu0 0.0
    %770 = vmatmul.mubr.f32.gmra.mrb[0].mxu0 %v55
    %v771 = vpop.f32.mrb[0].mxu0
    %v772 = vadd.f32 %v628, %v771
    %v773 = vpop.f32.mrb[0].mxu0
    %774 = vmatprep.mubr.f32.mxu0 0.0
    %775 = vmatmul.mubr.f32.gmra.mrb[0].mxu0 %v56
    %v776 = vpop.f32.mrb[0].mxu0
    %v777 = vadd.f32 %v633, %v776
    %v778 = vpop.f32.mrb[0].mxu0
    %779 = vmatprep.mubr.f32.mxu0 0.0
    %780 = vmatmul.mubr.f32.gmra.mrb[0].mxu0 %v57
    %v781 = vpop.f32.mrb[0].mxu0
    %v782 = vadd.f32 %v638, %v781
    %v783 = vpop.f32.mrb[0].mxu0
    %784 = vmatprep.mubr.f32.mxu0 0.0
    %785 = vmatmul.mubr.f32.gmra.mrb[0].mxu0 %v58
    %v786 = vpop.f32.mrb[0].mxu0
    %v787 = vadd.f32 %v643, %v786
    %v788 = vpop.f32.mrb[0].mxu0
    %789 = vmatprep.mubr.f32.mxu0 0.0
    %790 = vmatmul.mubr.f32.gmra.mrb[0].mxu0 %v59
    %v791 = vpop.f32.mrb[0].mxu0
    %v792 = vadd.f32 %v648, %v791
    %v793 = vpop.f32.mrb[0].mxu0
    %794 = vmatprep.mubr.f32.mxu0 0.0
    %795 = vmatmul.mubr.f32.gmra.mrb[0].mxu0 %v60
    %v796 = vpop.f32.mrb[0].mxu0
    %v797 = vadd.f32 %v653, %v796
    %v798 = vpop.f32.mrb[0].mxu0
    %799 = vmatprep.mubr.f32.mxu0 0.0
    %800 = vmatmul.mubr.f32.gmra.mrb[0].mxu0 %v61
    %v801 = vpop.f32.mrb[0].mxu0
    %v802 = vadd.f32 %v658, %v801
    %v803 = vpop.f32.mrb[0].mxu0
    %804 = vmatprep.mubr.f32.mxu0 0.0
    %805 = vmatmul.mubr.f32.gmra.mrb[0].mxu0 %v62
    %v806 = vpop.f32.mrb[0].mxu0
    %v807 = vadd.f32 %v663, %v806
    %v808 = vpop.f32.mrb[0].mxu0
    %809 = vmatprep.mubr.f32.mxu0 0.0
    %810 = vmatmul.mubr.f32.gmra.mrb[0].mxu0 %v63
    %v811 = vpop.f32.mrb[0].mxu0
    %v812 = vadd.f32 %v668, %v811
    %v813 = vpop.f32.mrb[0].mxu0
    %814 = vmatprep.mubr.f32.mxu0 0.0
    %815 = vmatmul.mubr.f32.gmra.mrb[0].mxu0 %v64
    %v816 = vpop.f32.mrb[0].mxu0
    %v817 = vadd.f32 %v673, %v816
    %v818 = vpop.f32.mrb[0].mxu0
    %819 = vmatprep.mubr.f32.mxu0 0.0
    %820 = vmatmul.mubr.f32.gmra.mrb[0].mxu0 %v65
    %v821 = vpop.f32.mrb[0].mxu0
    %v822 = vadd.f32 %v678, %v821
    %v823 = vpop.f32.mrb[0].mxu0
    %824 = vmatprep.mubr.f32.mxu0 0.0
    %825 = vmatmul.mubr.f32.gmra.mrb[0].mxu0 %v66
    %v826 = vpop.f32.mrb[0].mxu0
    %v827 = vadd.f32 %v683, %v826
    %v828 = vpop.f32.mrb[0].mxu0
    %829 = vmatprep.mubr.f32.mxu0 0.0
    %830 = vmatmul.mubr.f32.gmra.mrb[0].mxu0 %v67
    %v831 = vpop.f32.mrb[0].mxu0
    %v832 = vadd.f32 %v688, %v831
    %v833 = vpop.f32.mrb[0].mxu0
    %834 = vdwg.mxu0
    %v835 = vmul.f32 %v757, 0.5
    %v836 = vmul.f32 %v762, 0.5
    %v837 = vmul.f32 %v767, 0.5
    %v838 = vmul.f32 %v772, 0.5
    %v839 = vmul.f32 %v777, 0.5
    %v840 = vmul.f32 %v782, 0.5
    %v841 = vmul.f32 %v787, 0.5
    %v842 = vmul.f32 %v792, 0.5
    %v843 = vmul.f32 %v797, 0.5
    %v844 = vmul.f32 %v802, 0.5
    %v845 = vmul.f32 %v807, 0.5
    %v846 = vmul.f32 %v812, 0.5
    %v847 = vmul.f32 %v817, 0.5
    %v848 = vmul.f32 %v822, 0.5
    %v849 = vmul.f32 %v827, 0.5
    %v850 = vmul.f32 %v832, 0.5
    %v851 = vmul.f32 %v757, 0.044715
    %v852 = vmul.f32 %v762, 0.044715
    %v853 = vmul.f32 %v767, 0.044715
    %v854 = vmul.f32 %v772, 0.044715
    %v855 = vmul.f32 %v777, 0.044715
    %v856 = vmul.f32 %v782, 0.044715
    %v857 = vmul.f32 %v787, 0.044715
    %v858 = vmul.f32 %v792, 0.044715
    %v859 = vmul.f32 %v797, 0.044715
    %v860 = vmul.f32 %v802, 0.044715
    %v861 = vmul.f32 %v807, 0.044715
    %v862 = vmul.f32 %v812, 0.044715
    %v863 = vmul.f32 %v817, 0.044715
    %v864 = vmul.f32 %v822, 0.044715
    %v865 = vmul.f32 %v827, 0.044715
    %v866 = vmul.f32 %v832, 0.044715
    %v867 = vmul.f32 %v851, %v757
    %v868 = vmul.f32 %v852, %v762
    %v869 = vmul.f32 %v853, %v767
    %v870 = vmul.f32 %v854, %v772
    %v871 = vmul.f32 %v855, %v777
    %v872 = vmul.f32 %v856, %v782
    %v873 = vmul.f32 %v857, %v787
    %v874 = vmul.f32 %v858, %v792
    %v875 = vmul.f32 %v859, %v797
    %v876 = vmul.f32 %v860, %v802
    %v877 = vmul.f32 %v861, %v807
    %v878 = vmul.f32 %v862, %v812
    %v879 = vmul.f32 %v863, %v817
    %v880 = vmul.f32 %v864, %v822
    %v881 = vmul.f32 %v865, %v827
    %v882 = vmul.f32 %v866, %v832
    %v883 = vmul.f32 %v867, %v757
    %v884 = vmul.f32 %v868, %v762
    %v885 = vmul.f32 %v869, %v767
    %v886 = vmul.f32 %v870, %v772
    %v887 = vmul.f32 %v871, %v777
    %v888 = vmul.f32 %v872, %v782
    %v889 = vmul.f32 %v873, %v787
    %v890 = vmul.f32 %v874, %v792
    %v891 = vmul.f32 %v875, %v797
    %v892 = vmul.f32 %v876, %v802
    %v893 = vmul.f32 %v877, %v807
    %v894 = vmul.f32 %v878, %v812
    %v895 = vmul.f32 %v879, %v817
    %v896 = vmul.f32 %v880, %v822
    %v897 = vmul.f32 %v881, %v827
    %v898 = vmul.f32 %v882, %v832
    %v899 = vadd.f32 %v757, %v883
    %v900 = vadd.f32 %v762, %v884
    %v901 = vadd.f32 %v767, %v885
    %v902 = vadd.f32 %v772, %v886
    %v903 = vadd.f32 %v777, %v887
    %v904 = vadd.f32 %v782, %v888
    %v905 = vadd.f32 %v787, %v889
    %v906 = vadd.f32 %v792, %v890
    %v907 = vadd.f32 %v797, %v891
    %v908 = vadd.f32 %v802, %v892
    %v909 = vadd.f32 %v807, %v893
    %v910 = vadd.f32 %v812, %v894
    %v911 = vadd.f32 %v817, %v895
    %v912 = vadd.f32 %v822, %v896
    %v913 = vadd.f32 %v827, %v897
    %v914 = vadd.f32 %v832, %v898
    %v915 = vmul.f32 %v899, 0.7978846
    %v916 = vmul.f32 %v900, 0.7978846
    %v917 = vmul.f32 %v901, 0.7978846
    %v918 = vmul.f32 %v902, 0.7978846
    %v919 = vmul.f32 %v903, 0.7978846
    %v920 = vmul.f32 %v904, 0.7978846
    %v921 = vmul.f32 %v905, 0.7978846
    %v922 = vmul.f32 %v906, 0.7978846
    %v923 = vmul.f32 %v907, 0.7978846
    %v924 = vmul.f32 %v908, 0.7978846
    %v925 = vmul.f32 %v909, 0.7978846
    %v926 = vmul.f32 %v910, 0.7978846
    %v927 = vmul.f32 %v911, 0.7978846
    %v928 = vmul.f32 %v912, 0.7978846
    %v929 = vmul.f32 %v913, 0.7978846
    %v930 = vmul.f32 %v914, 0.7978846
    %v931 = vtanh.pop %v915
    %v932 = vtanh.pop %v916
    %v933 = vtanh.pop %v917
    %v934 = vtanh.pop %v918
    %v935 = vtanh.pop %v919
    %v936 = vtanh.pop %v920
    %v937 = vtanh.pop %v921
    %v938 = vtanh.pop %v922
    %v939 = vtanh.pop %v923
    %v940 = vtanh.pop %v924
    %v941 = vtanh.pop %v925
    %v942 = vtanh.pop %v926
    %v943 = vtanh.pop %v927
    %v944 = vtanh.pop %v928
    %v945 = vtanh.pop %v929
    %v946 = vtanh.pop %v930
    %v947 = vadd.f32 %v931, 1.0
    %v948 = vadd.f32 %v932, 1.0
    %v949 = vadd.f32 %v933, 1.0
    %v950 = vadd.f32 %v934, 1.0
    %v951 = vadd.f32 %v935, 1.0
    %v952 = vadd.f32 %v936, 1.0
    %v953 = vadd.f32 %v937, 1.0
    %v954 = vadd.f32 %v938, 1.0
    %v955 = vadd.f32 %v939, 1.0
    %v956 = vadd.f32 %v940, 1.0
    %v957 = vadd.f32 %v941, 1.0
    %v958 = vadd.f32 %v942, 1.0
    %v959 = vadd.f32 %v943, 1.0
    %v960 = vadd.f32 %v944, 1.0
    %v961 = vadd.f32 %v945, 1.0
    %v962 = vadd.f32 %v946, 1.0
    %v963 = vmul.f32 %v835, %v947
    %v964 = vmul.f32 %v836, %v948
    %v965 = vmul.f32 %v837, %v949
    %v966 = vmul.f32 %v838, %v950
    %v967 = vmul.f32 %v839, %v951
    %v968 = vmul.f32 %v840, %v952
    %v969 = vmul.f32 %v841, %v953
    %v970 = vmul.f32 %v842, %v954
    %v971 = vmul.f32 %v843, %v955
    %v972 = vmul.f32 %v844, %v956
    %v973 = vmul.f32 %v845, %v957
    %v974 = vmul.f32 %v846, %v958
    %v975 = vmul.f32 %v847, %v959
    %v976 = vmul.f32 %v848, %v960
    %v977 = vmul.f32 %v849, %v961
    %v978 = vmul.f32 %v850, %v962
    %980 = vset.pattern.permute.xlu0 0
    %981 = vperm.xlu0 %980, %v74
    %v982 = vpop.permute.xlu0 %981
    %984 = vmatprep.subr.mxu0 0.0
    %985 = vmatpush1.msra.mxu0 %v963
    %986 = vmatprep.subr.mxu0 0.0
    %987 = vmatpush1.msra.mxu0 %v964
    %988 = vmatprep.subr.mxu0 0.0
    %989 = vmatpush1.msra.mxu0 %v965
    %990 = vmatprep.subr.mxu0 0.0
    %991 = vmatpush1.msra.mxu0 %v966
    %992 = vmatprep.subr.mxu0 0.0
    %993 = vmatpush1.msra.mxu0 %v967
    %994 = vmatprep.subr.mxu0 0.0
    %995 = vmatpush1.msra.mxu0 %v968
    %996 = vmatprep.subr.mxu0 0.0
    %997 = vmatpush1.msra.mxu0 %v969
    %998 = vmatprep.subr.mxu0 0.0
    %999 = vmatpush1.msra.mxu0 %v970
    %1000 = vmatprep.subr.mxu0 0.0
    %1001 = vmatpush1.msra.mxu0 %v971
    %1002 = vmatprep.subr.mxu0 0.0
    %1003 = vmatpush1.msra.mxu0 %v972
    %1004 = vmatprep.subr.mxu0 0.0
    %1005 = vmatpush1.msra.mxu0 %v973
    %1006 = vmatprep.subr.mxu0 0.0
    %1007 = vmatpush1.msra.mxu0 %v974
    %1008 = vmatprep.subr.mxu0 0.0
    %1009 = vmatpush1.msra.mxu0 %v975
    %1010 = vmatprep.subr.mxu0 0.0
    %1011 = vmatpush1.msra.mxu0 %v976
    %1012 = vmatprep.subr.mxu0 0.0
    %1013 = vmatpush1.msra.mxu0 %v977
    %1014 = vmatprep.subr.mxu0 0.0
    %1015 = vmatpush1.msra.mxu0 %v978
    %1016 = vmatprep.subr.mxu0 0.0
    %1017 = vmatpush1.msra.mxu0 0.0
    %1018 = vmatprep.subr.mxu0 0.0
    %1019 = vmatpush1.msra.mxu0 0.0
    %1020 = vmatprep.subr.mxu0 0.0
    %1021 = vmatpush1.msra.mxu0 0.0
    %1022 = vmatprep.subr.mxu0 0.0
    %1023 = vmatpush1.msra.mxu0 0.0
    %1024 = vmatprep.subr.mxu0 0.0
    %1025 = vmatpush1.msra.mxu0 0.0
    %1026 = vmatprep.subr.mxu0 0.0
    %1027 = vmatpush1.msra.mxu0 0.0
    %1028 = vmatprep.subr.mxu0 0.0
    %1029 = vmatpush1.msra.mxu0 0.0
    %1030 = vmatprep.subr.mxu0 0.0
    %1031 = vmatpush1.msra.mxu0 0.0
    %1032 = vmatprep.subr.mxu0 0.0
    %1033 = vmatpush1.msra.mxu0 0.0
    %1034 = vmatprep.subr.mxu0 0.0
    %1035 = vmatpush1.msra.mxu0 0.0
    %1036 = vmatprep.subr.mxu0 0.0
    %1037 = vmatpush1.msra.mxu0 0.0
    %1038 = vmatprep.subr.mxu0 0.0
    %1039 = vmatpush1.msra.mxu0 0.0
    %1040 = vmatprep.subr.mxu0 0.0
    %1041 = vmatpush1.msra.mxu0 0.0
    %1042 = vmatprep.subr.mxu0 0.0
    %1043 = vmatpush1.msra.mxu0 0.0
    %1044 = vmatprep.subr.mxu0 0.0
    %1045 = vmatpush1.msra.mxu0 0.0
    %1046 = vmatprep.subr.mxu0 0.0
    %1047 = vmatpush1.msra.mxu0 0.0
    %1048 = vmatprep.mubr.f32.mxu0 0.0
    %1049 = vmatmul.mubr.f32.gmra.mrb[0].mxu0 %v72
    %v1050 = vpop.f32.mrb[0].mxu0
    %v1051 = vadd.f32 %v982, %v1050
    %v1052 = vpop.f32.mrb[0].mxu0
    %1053 = vdwg.mxu0
    %v1054 = vand.u32 2147483647, %v1051
    %vm1055 = vcmp.le.f32.partialorder %v1054, 0.7853982
    %vm1056 = vcmp.lt.s32.totalorder %v1051, 0
    %v1057 = vand.u32 %v1051, 2139095040
    %v1058 = vshrl.u32 %v1057, 23
    %v1059 = vsub.s32 %v1058, 127
    %v1060 = vand.u32 2147483647, %v1051
    %v1061 = vand.u32 %v1060, 8388607
    %v1062 = vor.u32 %v1061, 8388608
    %v1063 = vsub.s32 0, %v1062
    %v1064 = vadd.s32 %v1059, 1
    %vm1065 = vcmp.gt.s32.totalorder %v1064, 0
    %v1066 = vsel %vm1065, %v1064, 0
    %v1067 = vshrl.u32 %v1066, 5
    %v1068 = vand.u32 %v1066, 31
    %v1069 = vsub.s32 32, %v1068
    %v1070 = vshrl.u32 683565275, %v1069
    %v1071 = vshll.u32 683565275, %v1068
    %v1072 = vshrl.u32 2475754826, %v1069
    %v1073 = vor.u32 %v1071, %v1072
    %v1074 = vshll.u32 2475754826, %v1068
    %v1075 = vshrl.u32 2131351028, %v1069
    %v1076 = vor.u32 %v1074, %v1075
    %v1077 = vshll.u32 2131351028, %v1068
    %v1078 = vshrl.u32 2102212464, %v1069
    %v1079 = vor.u32 %v1077, %v1078
    %v1080 = vshll.u32 2102212464, %v1068
    %v1081 = vshrl.u32 920167782, %v1069
    %v1082 = vor.u32 %v1080, %v1081
    %v1083 = vshll.u32 920167782, %v1068
    %v1084 = vshrl.u32 1326507024, %v1069
    %v1085 = vor.u32 %v1083, %v1084
    %vm1086 = vcmp.lt.s32.totalorder %v1067, 1
    %vm1087 = vcmp.lt.s32.totalorder %v1067, 2
    %vm1088 = vcmp.lt.s32.totalorder %v1067, 3
    %vm1089 = vcmp.lt.s32.totalorder %v1067, 4
    %v1090 = vsel %vm1086, %v1070, %v1073
    %v1091 = vsel %vm1089, %v1079, 2102212464
    %v1092 = vsel %vm1088, %v1076, %v1091
    %v1093 = vsel %vm1087, %v1090, %v1092
    %v1094 = vsel %vm1086, %v1073, %v1076
    %v1095 = vsel %vm1089, %v1082, 920167782
    %v1096 = vsel %vm1088, %v1079, %v1095
    %v1097 = vsel %vm1087, %v1094, %v1096
    %v1098 = vsel %vm1086, %v1076, %v1079
    %v1099 = vsel %vm1089, %v1085, 1326507024
    %v1100 = vsel %vm1088, %v1082, %v1099
    %v1101 = vsel %vm1087, %v1098, %v1100
    %v1102 = vshll.u32 %v1062, 8
    %v1103 = vmul.u32.u64.compose %v1102, %v1101
    %v1104 = vextract.low.u32 %v1103
    %v1105 = vextract.high.u32 %v1103
    %v1106 = vmul.u32.u64.compose %v1102, %v1097
    %v1107 = vextract.low.u32 %v1106
    %v1108 = vextract.high.u32 %v1106
    %v1109 = vmul.u32 %v1102, %v1093
    %v1110 = vadd.s32 %v1105, %v1107
    %vm1111 = vc.u32 %v1105, %v1107
    %v1112 = vadd.s32 %v1108, 1
    %v1113 = vsel %vm1111, %v1112, %v1108
    %v1114 = vadd.s32 %v1109, %v1113
    %v1115 = vadd.s32 %v1114, 536870912
    %v1116 = vshrl.u32 %v1115, 30
    %v1117 = vshll.u32 %v1116, 30
    %v1118 = vsub.s32 %v1114, %v1117
    %vm1119 = vcmp.lt.s32.totalorder %v1118, 0
    %v1120 = vsub.s32 0, %v1118
    %v1121 = vsel %vm1119, %v1120, %v1118
    %v1122 = vclz %v1121
    %v1123 = vsub.s32 %v1122, 2
    %vm1124 = vcmp.gt.s32.totalorder 0, %v1123
    %v1125 = vsel %vm1124, 0, %v1123
    %v1126 = vsub.s32 32, %v1125
    %v1127 = vshll.u32 %v1118, %v1125
    %v1128 = vshrl.u32 %v1110, %v1126
    %v1129 = vor.u32 %v1127, %v1128
    %v1130 = vsub.s32 4294967266, %v1125
    %v1131 = vadd.s32 %v1130, 127
    %v1132 = vshll.u32 %v1131, 23
    %v1133 = vor.u32 4788187, %v1132
    %v1134 = vand.u32 2147483647, %v1133
    %v1136 = vcvt.s32.f32 %v1129
    %v1137 = vmul.f32 %v1136, %v1134
    %v1138 = vxor.u32 %v1137, 2147483648
    %v1139 = vsel %vm1056, %v1138, %v1137
    %v1140 = vsub.s32 4, %v1116
    %v1141 = vsel %vm1056, %v1140, %v1116
    %v1142 = vsel %vm1055, %v1051, %v1139
    %v1143 = vsel %vm1055, 0, %v1141
    %v1144 = vcosq.f32.pop %v1142
    %v1145 = vsinq.f32.pop %v1142
    %vm1146 = vweird.f32 %v1051
    %v1147 = vadd.s32 %v1143, 3
    %v1148 = vand.u32 %v1147, 3
    %vm1149 = vcmp.lt.s32.totalorder %v1148, 2
    %vm1150 = vcmp.eq.s32.totalorder %v1148, 0
    %v1151 = vxor.u32 %v1145, 2147483648
    %v1152 = vsel %vm1150, %v1144, %v1151
    %vm1153 = vcmp.eq.s32.totalorder %v1148, 2
    %v1154 = vxor.u32 %v1144, 2147483648
    %v1155 = vsel %vm1153, %v1154, %v1145
    %v1156 = vsel %vm1149, %v1152, %v1155
    %v1157 = vsel %vm1146, nan, %v1156
    %v1158 = vmul.f32 %v270, %v1157
    %v1159 = vrot.slane %v1158, 4
    %v1160 = vadd.f32 %v1158, %v1159
    %v1161 = vrot.slane %v1160, 2
    %v1162 = vadd.f32 %v1160, %v1161
    %v1163 = vrot.slane %v1162, 1
    %v1164 = vadd.f32 %v1162, %v1163
    %1165 = vst [vmem:[#allocation5] sm:$0x1] %v1164
    // Predicated region
    $region26: #{tpu_custom_call.1} parent=1 // pred_check
      _
    $region27: #{tpu_custom_call.1} parent=1 // pred_check_branch
      %1167 = sbr.rel (0) target = $region29
    $region28: #{tpu_custom_call.1} parent=1 // pred_region
      %s1169 = ssub.s32 16, 16
      %1170 = vsyncadd [#allocation4], %s1169
      %s1172 = sshll.u32 [#allocation5], 4
      %s1173 = int_to_ptr.vmem [resolvable:$true] %s1172
      %1175 = dma.vmem_to_hbm [thread:$0]  %s1173, 16, %s5, [#allocation4]
    $region29: #{tpu_custom_call.1} parent=1 // pred_fallthru
      _
    // Predicated region
    $region30: #{tpu_custom_call.1} parent=1 // pred_check
      _
    $region31: #{tpu_custom_call.1} parent=1 // pred_check_branch
      %1177 = sbr.rel (0) target = $region33
    $region32: #{tpu_custom_call.1} parent=1 // pred_region
      %1178 = dma.done [#allocation4], 16
    $region33: #{tpu_custom_call.1} parent=1 // pred_fallthru
      _
    %1179 = vsyncpa [#allocation3], 1
    %1180 = vsyncpa [#allocation4], 1

</llo_original>
